<compile_context>
chip_gen: v5e
topology: v5e:2x2
jax: 0.10.0
libtpu: 0.0.40
codegen_flags: <defaults>
</compile_context>

<pallas_src>
import functools

import jax
import jax.numpy as jnp
from jax.experimental import pallas as pl
from jax.experimental.pallas import tpu as pltpu


def _gru_weak_order_kernel(xcat_ref, wbig_ref, bbig_ref, wstk_ref, bg_ref,
                           out_ref, *, emb_size, hidden_size, compute_dtype):
    E, H = emb_size, hidden_size
    cd = compute_dtype

    xcat = xcat_ref[...]                              # (TM, 2E + H) in compute dtype
    state = xcat[:, 2 * E:].astype(jnp.float32)       # (TM, H) prefix-mean state (f32 math)

    # Stage 1: one fused matmul -> [r_pre | u_pre | cand_inp | sem_pre | nbr_pre]
    s1 = jnp.dot(xcat, wbig_ref[...],
                 preferred_element_type=jnp.float32) + bbig_ref[...]
    r = jax.nn.sigmoid(s1[:, 0 * H:1 * H])
    u = jax.nn.sigmoid(s1[:, 1 * H:2 * H])
    c_pre = s1[:, 2 * H:3 * H]                        # inp @ Wc[:E] + b_c
    sem = jax.nn.relu(s1[:, 3 * H:4 * H])             # relu(layer1(inp))
    nbr_emb = jax.nn.relu(s1[:, 4 * H:5 * H])         # relu(layer2(neighbors))

    # Stage 2: state-dependent / post-activation matmuls (split dots, no concats).
    c = jnp.tanh(c_pre + jnp.dot((r * state).astype(cd), wstk_ref[0],
                                 preferred_element_type=jnp.float32))
    new_gate = jax.nn.sigmoid(
        jnp.dot(sem.astype(cd), wstk_ref[1], preferred_element_type=jnp.float32)
        + jnp.dot(nbr_emb.astype(cd), wstk_ref[2], preferred_element_type=jnp.float32)
        + bg_ref[...])

    new_h = u * state + (1.0 - u) * c * new_gate
    out_ref[...] = new_h.astype(out_ref.dtype)


def _pack_weights(params, emb_size, hidden_size, compute_dtype):
    """Pack the 12 weight/bias tensors into 4 arrays matching the kernel layout."""
    E, H = emb_size, hidden_size
    wr, br = params["reset"]        # (E+H, H), (1, H)
    wu, bu = params["update"]
    wc, bc = params["candidate"]
    w1, b1 = params["layer1"]       # (E, H)
    w2, b2 = params["layer2"]
    wg, bg = params["new_gate"]     # (2H, H)

    zEH = jnp.zeros((E, H), jnp.float32)
    zHH = jnp.zeros((H, H), jnp.float32)

    # x_cat row layout: [inp (E) | nbr (E) | state (H)]
    row_inp = jnp.concatenate([wr[:E], wu[:E], wc[:E], w1, zEH], axis=1)   # (E, 5H)
    row_nbr = jnp.concatenate([zEH, zEH, zEH, zEH, w2], axis=1)            # (E, 5H)
    row_st = jnp.concatenate([wr[E:], wu[E:], zHH, zHH, zHH], axis=1)      # (H, 5H)
    w_big = jnp.concatenate([row_inp, row_nbr, row_st], axis=0)            # (2E+H, 5H)
    b_big = jnp.concatenate([br, bu, bc, b1, b2], axis=1)                  # (1, 5H)

    w_stack = jnp.stack([wc[E:], wg[:H], wg[H:]], axis=0)                  # (3, H, H)
    return (w_big.astype(compute_dtype), b_big.astype(jnp.float32),
            w_stack.astype(compute_dtype), bg.astype(jnp.float32))


def gru_weak_order_pallas(x, params, hidden_size, *, compute_dtype=jnp.float32):
    """x: (B, L, input_size) f32.  Returns (outputs (B, L, H), last_state (B, H))."""
    B, L, input_size = x.shape
    E = input_size // 2
    H = hidden_size
    assert E == H, "module semantics require hidden_size == input_size / 2"

    # Exclusive prefix-mean "state": state[:, l] = mean(x[:, :l, :E]); zeros at l==0.
    inp = x[:, :, :E].astype(jnp.float32)
    excl_sum = jnp.cumsum(inp, axis=1) - inp                       # sum over [0, l)
    denom = jnp.maximum(jnp.arange(L, dtype=jnp.float32), 1.0)     # l>=1 -> l, l==0 -> 1
    state = excl_sum / denom[None, :, None]                        # (B, L, H)

    # Rows are [inp | nbr | state] == [x | state] (x is already [inp | nbr]).
    x_cat = jnp.concatenate([x.astype(jnp.float32), state], axis=-1)
    x_cat = x_cat.reshape(B * L, 2 * E + H).astype(compute_dtype)

    w_big, b_big, w_stack, b_g = _pack_weights(params, E, H, compute_dtype)

    # Fully-parallel row tiling; pad rows to a sublane-friendly tile.
    M = B * L
    TM = min(512, ((M + 7) // 8) * 8)
    M_pad = pl.cdiv(M, TM) * TM
    if M_pad != M:
        x_cat = jnp.pad(x_cat, ((0, M_pad - M), (0, 0)))

    kernel = functools.partial(_gru_weak_order_kernel, emb_size=E,
                               hidden_size=H, compute_dtype=compute_dtype)

    out = pl.pallas_call(
        kernel,
        out_shape=jax.ShapeDtypeStruct((M_pad, H), jnp.float32),
        grid_spec=pltpu.PrefetchScalarGridSpec(
            num_scalar_prefetch=0,
            grid=(M_pad // TM,),
            in_specs=[
                pl.BlockSpec((TM, 2 * E + H), lambda i: (i, 0)),      # packed rows
                pl.BlockSpec((2 * E + H, 5 * H), lambda i: (0, 0)),   # fused stage-1 W
                pl.BlockSpec((1, 5 * H), lambda i: (0, 0)),           # fused stage-1 b
                pl.BlockSpec((3, H, H), lambda i: (0, 0, 0)),         # [Wc_state, Wg_sem, Wg_nbr]
                pl.BlockSpec((1, H), lambda i: (0, 0)),               # b_new_gate
            ],
            out_specs=pl.BlockSpec((TM, H), lambda i: (i, 0)),
        ),
        compiler_params=pltpu.CompilerParams(
            dimension_semantics=("parallel",)),   # no serial axis; v7x can shard it
    )(x_cat, w_big, b_big, w_stack, b_g)

    outputs = out[:M].reshape(B, L, H)             # row-major: no transpose needed
    return outputs, outputs[:, -1, :]


def gru_weak_order_reference(x, params, hidden_size):
    """Pure-JAX reference matching the PyTorch forward."""
    B, L, input_size = x.shape
    E = input_size // 2
    H = hidden_size

    def linear(name, v):
        w, b = params[name]
        return v @ w + b

    outputs = []
    for l in range(L):
        if l == 0:
            state = jnp.zeros((B, H), jnp.float32)
        else:
            state = jnp.mean(x[:, :l, :E], axis=1)
        xl = x[:, l, :]
        inp, nbr = xl[:, :E], xl[:, E:]
        gate_in = jnp.concatenate([inp, state], axis=1)
        r = jax.nn.sigmoid(linear("reset", gate_in))
        u = jax.nn.sigmoid(linear("update", gate_in))
        c = jnp.tanh(linear("candidate", jnp.concatenate([inp, r * state], axis=1)))
        semantic_emb = jax.nn.relu(linear("layer1", inp))
        neighbor_emb = jax.nn.relu(linear("layer2", nbr))
        new_gate = jax.nn.sigmoid(
            linear("new_gate", jnp.concatenate([semantic_emb, neighbor_emb], axis=1)))
        new_h = u * state + (1.0 - u) * c * new_gate
        outputs.append(new_h)
    out = jnp.stack(outputs, axis=1)
    return out, out[:, -1, :]


def init_params(key, input_size, hidden_size):
    """Deterministic synthetic init.  Weights stored as (in, out); biases as (1, out)."""
    E = input_size // 2
    H = hidden_size
    shapes = {
        "reset":     (E + H, H),
        "update":    (E + H, H),
        "candidate": (E + H, H),
        "layer1":    (E, H),
        "layer2":    (E, H),
        "new_gate":  (2 * H, H),
    }
    params = {}
    for i, (name, (fin, fout)) in enumerate(shapes.items()):
        kw, kb = jax.random.split(jax.random.fold_in(key, i))
        scale = 1.0 / jnp.sqrt(jnp.float32(fin))
        w = jax.random.uniform(kw, (fin, fout), jnp.float32, -scale, scale)
        b = jax.random.uniform(kb, (1, fout), jnp.float32, -scale, scale)
        params[name] = (w, b)
    # NOTE: tmp1/tmp2/new_r_gate exist in the PyTorch __init__ but are unused in
    # forward, so they are intentionally not materialized here.
    return params


if __name__ == "__main__":
    B, L, H = 2, 8, 32
    input_size = 2 * H  # module requires hidden_size == input_size / 2

    key = jax.random.PRNGKey(0)
    kx, kp = jax.random.split(key)
    x = jax.random.normal(kx, (B, L, input_size), jnp.float32)
    params = init_params(kp, input_size, H)

    ref_out, ref_state = gru_weak_order_reference(x, params, H)

    # f32 matmul operands: matches the PyTorch numerics tightly.
    out, state = gru_weak_order_pallas(x, params, H)
    out = jax.block_until_ready(out)
    state = jax.block_until_ready(state)
    assert out.shape == (B, L, H) and state.shape == (B, H)
    assert jnp.allclose(out, ref_out, atol=1e-4, rtol=1e-4)
    assert jnp.allclose(state, ref_state, atol=1e-4, rtol=1e-4)

    # bf16 matmul operands (f32 accumulation / gating): faster MXU path.
    out_bf, state_bf = gru_weak_order_pallas(x, params, H, compute_dtype=jnp.bfloat16)
    out_bf = jax.block_until_ready(out_bf)
    assert jnp.allclose(out_bf, ref_out, atol=3e-2, rtol=3e-2)
    assert jnp.allclose(state_bf, ref_state, atol=3e-2, rtol=3e-2)

    print("KERNEL_OK")
</pallas_src>

<mosaic_0001>
module attributes {stable_mosaic.version = 11 : i64} {
  func.func @_gru_weak_order_kernel(%arg0: i32, %arg1: memref<16x96xf32, #tpu.memory_space<vmem>>, %arg2: memref<96x160xf32, #tpu.memory_space<vmem>>, %arg3: memref<1x160xf32, #tpu.memory_space<vmem>>, %arg4: memref<3x32x32xf32, #tpu.memory_space<vmem>>, %arg5: memref<1x32xf32, #tpu.memory_space<vmem>>, %arg6: memref<16x32xf32, #tpu.memory_space<vmem>>) attributes {dimension_semantics = [#tpu.dimension_semantics<parallel>], iteration_bounds = array<i64: 1>, scalar_prefetch = 0 : i64, scratch_operands = 0 : i64, tpu.core_type = #tpu.core_type<tc>, window_params = [{transform_indices = @transform_0, window_bounds = array<i64: 16, 96>}, {pipeline_mode = #tpu.pipeline_mode<synchronous>, transform_indices = @transform_1, window_bounds = array<i64: 96, 160>}, {pipeline_mode = #tpu.pipeline_mode<synchronous>, transform_indices = @transform_2, window_bounds = array<i64: 1, 160>}, {pipeline_mode = #tpu.pipeline_mode<synchronous>, transform_indices = @transform_3, window_bounds = array<i64: 3, 32, 32>}, {pipeline_mode = #tpu.pipeline_mode<synchronous>, transform_indices = @transform_4, window_bounds = array<i64: 1, 32>}, {transform_indices = @transform_5, window_bounds = array<i64: 16, 32>}]} {
    %c0 = arith.constant 0 : index
    %c0_0 = arith.constant 0 : index
    %0 = vector.load %arg1[%c0, %c0_0] : memref<16x96xf32, #tpu.memory_space<vmem>>, vector<16x96xf32>
    %1 = vector.extract_strided_slice %0 {offsets = [0, 64], sizes = [16, 32], strides = [1, 1]} : vector<16x96xf32> to vector<16x32xf32>
    %c0_1 = arith.constant 0 : index
    %c0_2 = arith.constant 0 : index
    %2 = vector.load %arg2[%c0_1, %c0_2] : memref<96x160xf32, #tpu.memory_space<vmem>>, vector<96x160xf32>
    %cst = arith.constant dense<0.000000e+00> : vector<16x160xf32>
    %3 = tpu.matmul %0, %2, %cst {dimension_numbers = #tpu.dot_dimension_numbers<[1], [0], [0], [1], [0, 0, 1, 1], [], []>} : vector<16x96xf32>, vector<96x160xf32>, vector<16x160xf32> -> vector<16x160xf32>
    %c0_3 = arith.constant 0 : index
    %c0_4 = arith.constant 0 : index
    %4 = vector.load %arg3[%c0_3, %c0_4] : memref<1x160xf32, #tpu.memory_space<vmem>>, vector<1x160xf32>
    %5 = vector.broadcast %4 : vector<1x160xf32> to vector<16x160xf32>
    %6 = arith.addf %3, %5 : vector<16x160xf32>
    %7 = vector.extract_strided_slice %6 {offsets = [0, 0], sizes = [16, 32], strides = [1, 1]} : vector<16x160xf32> to vector<16x32xf32>
    %8 = arith.negf %7 : vector<16x32xf32>
    %9 = math.exp %8 : vector<16x32xf32>
    %cst_5 = arith.constant 1.000000e+00 : f32
    %10 = vector.broadcast %cst_5 : f32 to vector<16x32xf32>
    %11 = arith.addf %10, %9 : vector<16x32xf32>
    %12 = arith.divf %10, %11 : vector<16x32xf32>
    %13 = vector.extract_strided_slice %6 {offsets = [0, 32], sizes = [16, 32], strides = [1, 1]} : vector<16x160xf32> to vector<16x32xf32>
    %14 = arith.negf %13 : vector<16x32xf32>
    %15 = math.exp %14 : vector<16x32xf32>
    %cst_6 = arith.constant 1.000000e+00 : f32
    %16 = vector.broadcast %cst_6 : f32 to vector<16x32xf32>
    %17 = arith.addf %16, %15 : vector<16x32xf32>
    %18 = arith.divf %16, %17 : vector<16x32xf32>
    %19 = vector.extract_strided_slice %6 {offsets = [0, 64], sizes = [16, 32], strides = [1, 1]} : vector<16x160xf32> to vector<16x32xf32>
    %20 = vector.extract_strided_slice %6 {offsets = [0, 96], sizes = [16, 32], strides = [1, 1]} : vector<16x160xf32> to vector<16x32xf32>
    %cst_7 = arith.constant 0.000000e+00 : f32
    %21 = vector.broadcast %cst_7 : f32 to vector<16x32xf32>
    %22 = arith.maximumf %20, %21 : vector<16x32xf32>
    %23 = vector.extract_strided_slice %6 {offsets = [0, 128], sizes = [16, 32], strides = [1, 1]} : vector<16x160xf32> to vector<16x32xf32>
    %cst_8 = arith.constant 0.000000e+00 : f32
    %24 = vector.broadcast %cst_8 : f32 to vector<16x32xf32>
    %25 = arith.maximumf %23, %24 : vector<16x32xf32>
    %26 = arith.mulf %12, %1 : vector<16x32xf32>
    %c0_9 = arith.constant 0 : index
    %c0_10 = arith.constant 0 : index
    %c0_11 = arith.constant 0 : index
    %27 = vector.load %arg4[%c0_9, %c0_10, %c0_11] : memref<3x32x32xf32, #tpu.memory_space<vmem>>, vector<1x32x32xf32>
    %28 = vector.shape_cast %27 : vector<1x32x32xf32> to vector<32x32xf32>
    %cst_12 = arith.constant dense<0.000000e+00> : vector<16x32xf32>
    %29 = tpu.matmul %26, %28, %cst_12 {dimension_numbers = #tpu.dot_dimension_numbers<[1], [0], [0], [1], [0, 0, 1, 1], [], []>} : vector<16x32xf32>, vector<32x32xf32>, vector<16x32xf32> -> vector<16x32xf32>
    %30 = arith.addf %19, %29 : vector<16x32xf32>
    %31 = math.tanh %30 : vector<16x32xf32>
    %c1 = arith.constant 1 : index
    %c0_13 = arith.constant 0 : index
    %c0_14 = arith.constant 0 : index
    %32 = vector.load %arg4[%c1, %c0_13, %c0_14] : memref<3x32x32xf32, #tpu.memory_space<vmem>>, vector<1x32x32xf32>
    %33 = vector.shape_cast %32 : vector<1x32x32xf32> to vector<32x32xf32>
    %cst_15 = arith.constant dense<0.000000e+00> : vector<16x32xf32>
    %34 = tpu.matmul %22, %33, %cst_15 {dimension_numbers = #tpu.dot_dimension_numbers<[1], [0], [0], [1], [0, 0, 1, 1], [], []>} : vector<16x32xf32>, vector<32x32xf32>, vector<16x32xf32> -> vector<16x32xf32>
    %c2 = arith.constant 2 : index
    %c0_16 = arith.constant 0 : index
    %c0_17 = arith.constant 0 : index
    %35 = vector.load %arg4[%c2, %c0_16, %c0_17] : memref<3x32x32xf32, #tpu.memory_space<vmem>>, vector<1x32x32xf32>
    %36 = vector.shape_cast %35 : vector<1x32x32xf32> to vector<32x32xf32>
    %cst_18 = arith.constant dense<0.000000e+00> : vector<16x32xf32>
    %37 = tpu.matmul %25, %36, %cst_18 {dimension_numbers = #tpu.dot_dimension_numbers<[1], [0], [0], [1], [0, 0, 1, 1], [], []>} : vector<16x32xf32>, vector<32x32xf32>, vector<16x32xf32> -> vector<16x32xf32>
    %38 = arith.addf %34, %37 : vector<16x32xf32>
    %c0_19 = arith.constant 0 : index
    %c0_20 = arith.constant 0 : index
    %39 = vector.load %arg5[%c0_19, %c0_20] : memref<1x32xf32, #tpu.memory_space<vmem>>, vector<1x32xf32>
    %40 = vector.broadcast %39 : vector<1x32xf32> to vector<16x32xf32>
    %41 = arith.addf %38, %40 : vector<16x32xf32>
    %42 = arith.negf %41 : vector<16x32xf32>
    %43 = math.exp %42 : vector<16x32xf32>
    %cst_21 = arith.constant 1.000000e+00 : f32
    %44 = vector.broadcast %cst_21 : f32 to vector<16x32xf32>
    %45 = arith.addf %44, %43 : vector<16x32xf32>
    %46 = arith.divf %44, %45 : vector<16x32xf32>
    %47 = arith.mulf %18, %1 : vector<16x32xf32>
    %cst_22 = arith.constant 1.000000e+00 : f32
    %48 = vector.broadcast %cst_22 : f32 to vector<16x32xf32>
    %49 = arith.subf %48, %18 : vector<16x32xf32>
    %50 = arith.mulf %49, %31 : vector<16x32xf32>
    %51 = arith.mulf %50, %46 : vector<16x32xf32>
    %52 = arith.addf %47, %51 : vector<16x32xf32>
    %c0_23 = arith.constant 0 : index
    %c0_24 = arith.constant 0 : index
    %53 = vector.load %arg6[%c0_23, %c0_24] : memref<16x32xf32, #tpu.memory_space<vmem>>, vector<16x32xf32>
    tpu.vector_store %arg6[%c0_23, %c0_24], %52 {strides = array<i32>} : memref<16x32xf32, #tpu.memory_space<vmem>>, vector<16x32xf32>,
    return
  }
  func.func @transform_0(%arg0: i32) -> (i32, i32) {
    %c0_i32 = arith.constant 0 : i32
    %c0_i32_0 = arith.constant 0 : i32
    return %arg0, %c0_i32 : i32, i32
  }
  func.func @transform_1(%arg0: i32) -> (i32, i32) {
    %c0_i32 = arith.constant 0 : i32
    %c0_i32_0 = arith.constant 0 : i32
    %c0_i32_1 = arith.constant 0 : i32
    return %c0_i32, %c0_i32_0 : i32, i32
  }
  func.func @transform_2(%arg0: i32) -> (i32, i32) {
    %c0_i32 = arith.constant 0 : i32
    %c0_i32_0 = arith.constant 0 : i32
    %c0_i32_1 = arith.constant 0 : i32
    return %c0_i32, %c0_i32_0 : i32, i32
  }
  func.func @transform_3(%arg0: i32) -> (i32, i32, i32) {
    %c0_i32 = arith.constant 0 : i32
    %c0_i32_0 = arith.constant 0 : i32
    %c0_i32_1 = arith.constant 0 : i32
    %c0_i32_2 = arith.constant 0 : i32
    return %c0_i32, %c0_i32_0, %c0_i32_1 : i32, i32, i32
  }
  func.func @transform_4(%arg0: i32) -> (i32, i32) {
    %c0_i32 = arith.constant 0 : i32
    %c0_i32_0 = arith.constant 0 : i32
    %c0_i32_1 = arith.constant 0 : i32
    return %c0_i32, %c0_i32_0 : i32, i32
  }
  func.func @transform_5(%arg0: i32) -> (i32, i32) {
    %c0_i32 = arith.constant 0 : i32
    %c0_i32_0 = arith.constant 0 : i32
    return %arg0, %c0_i32 : i32, i32
  }
}

</mosaic_0001>

<llo_original>
// kernel: tpu_custom_call.1
$region0: #{tpu_custom_call.1}
  #allocation0 [shape = 'u32[]', space=smem, size = 0x4, offset = 0x4, fixed_abs, tag = 'smem constant byte address 0x4 - core index']
  #allocation1 [shape = 'u32[72,128]{1,0:T(1,128)}', space=vmem, size = 0x9000, scoped, tag = 'internal scratch']
  %s0 = inlined_call_operand.vmem [shape: f32[16,96], index: 0, kind: input, shape index: {}]
  %s1 = inlined_call_operand.vmem [shape: f32[96,160], index: 1, kind: input, shape index: {}]
  %s2 = inlined_call_operand.vmem [shape: f32[1,160], index: 2, kind: input, shape index: {}]
  %s3 = inlined_call_operand.vmem [shape: f32[3,32,32], index: 3, kind: input, shape index: {}]
  %s4 = inlined_call_operand.vmem [shape: f32[1,32], index: 4, kind: input, shape index: {}]
  %s5 = inlined_call_operand.hbm [shape: f32[16,32], index: 5, kind: output, shape index: {}]
  %s6 = sld [smem:[#allocation0]]
  $region30: #{tpu_custom_call.1} parent=0
    _
  %s8 = ssub.s32 1, %s6
  %s9 = scalar_select 0, %s8, %s6
  $region1: #{tpu_custom_call.1} parent=0
    #allocation2 [shape = 'u8[8192]{0}', space=vmem, size = 0x2000, scoped, tag = 'output window, operand 0, single buffered']
    #allocation3 [shape = 's32[1]{0}', space=sflag, size = 0x4, scoped, tag = 'scoped memory for tpu_custom_call.1']
    %10 = vsyncpa [#allocation3], 0
    // Predicated region
    $region2: #{tpu_custom_call.1} parent=1 // pred_check
      _
    $region3: #{tpu_custom_call.1} parent=1 // pred_check_branch
      %12 = sbr.rel (0) target = $region5
    $region4: #{tpu_custom_call.1} parent=1 // pred_region
      _
    $region5: #{tpu_custom_call.1} parent=1 // pred_fallthru
      _
    // Predicated region
    $region6: #{tpu_custom_call.1} parent=1 // pred_check
      _
    $region7: #{tpu_custom_call.1} parent=1 // pred_check_branch
      %14 = sbr.rel (0) target = $region9
    $region8: #{tpu_custom_call.1} parent=1 // pred_region
      _
    $region9: #{tpu_custom_call.1} parent=1 // pred_fallthru
      _
    // Predicated region
    $region10: #{tpu_custom_call.1} parent=1 // pred_check
      _
    $region11: #{tpu_custom_call.1} parent=1 // pred_check_branch
      %16 = sbr.rel (0) target = $region13
    $region12: #{tpu_custom_call.1} parent=1 // pred_region
      _
    $region13: #{tpu_custom_call.1} parent=1 // pred_fallthru
      _
    // Predicated region
    $region14: #{tpu_custom_call.1} parent=1 // pred_check
      _
    $region15: #{tpu_custom_call.1} parent=1 // pred_check_branch
      %18 = sbr.rel (0) target = $region17
    $region16: #{tpu_custom_call.1} parent=1 // pred_region
      _
    $region17: #{tpu_custom_call.1} parent=1 // pred_fallthru
      _
    // Predicated region
    $region18: #{tpu_custom_call.1} parent=1 // pred_check
      _
    $region19: #{tpu_custom_call.1} parent=1 // pred_check_branch
      %20 = sbr.rel (0) target = $region21
    $region20: #{tpu_custom_call.1} parent=1 // pred_region
      _
    $region21: #{tpu_custom_call.1} parent=1 // pred_fallthru
      _
    %v21 = vld [vmem:[%s0] sm:$0xff]
    %v22 = vld [vmem:[%s0 + $0x8] sm:$0xff]
    %v23 = vld [vmem:[%s1] sm:$0xff]
    %v24 = vld [vmem:[%s1 + $0x8] sm:$0xff]
    %v25 = vld [vmem:[%s1 + $0x10] sm:$0xff]
    %v26 = vld [vmem:[%s1 + $0x18] sm:$0xff]
    %v27 = vld [vmem:[%s1 + $0x20] sm:$0xff]
    %v28 = vld [vmem:[%s1 + $0x28] sm:$0xff]
    %v29 = vld [vmem:[%s1 + $0x30] sm:$0xff]
    %v30 = vld [vmem:[%s1 + $0x38] sm:$0xff]
    %v31 = vld [vmem:[%s1 + $0x40] sm:$0xff]
    %v32 = vld [vmem:[%s1 + $0x48] sm:$0xff]
    %v33 = vld [vmem:[%s1 + $0x50] sm:$0xff]
    %v34 = vld [vmem:[%s1 + $0x58] sm:$0xff]
    %v35 = vld [vmem:[%s1 + $0x60] sm:$0xff]
    %v36 = vld [vmem:[%s1 + $0x68] sm:$0xff]
    %v37 = vld [vmem:[%s1 + $0x70] sm:$0xff]
    %v38 = vld [vmem:[%s1 + $0x78] sm:$0xff]
    %v39 = vld [vmem:[%s1 + $0x80] sm:$0xff]
    %v40 = vld [vmem:[%s1 + $0x88] sm:$0xff]
    %v41 = vld [vmem:[%s1 + $0x90] sm:$0xff]
    %v42 = vld [vmem:[%s1 + $0x98] sm:$0xff]
    %v43 = vld [vmem:[%s1 + $0xa0] sm:$0xff]
    %v44 = vld [vmem:[%s1 + $0xa8] sm:$0xff]
    %v45 = vld [vmem:[%s1 + $0xb0] sm:$0xff]
    %v46 = vld [vmem:[%s1 + $0xb8] sm:$0xff]
    %v47 = vld [vmem:[%s2] sm:$0x3]
    %v49 = vperm.slane %v47, 0
    %v50 = vperm.slane %v47, 1
    %vm53 = vcmask 785408
    %v55 = vsel %vm53, %v21, 0
    %v58 = vsel %vm53, %v22, 0
    %60 = vmatpush.msra.mxu0 0.0
    %61 = vmatpush.msra.mxu0 0.0
    %62 = vmatpush.msra.mxu0 0.0
    %63 = vmatpush.msra.mxu0 0.0
    %64 = vmatpush.msra.mxu0 %v45
    %65 = vmatpush.msra.mxu0 %v43
    %66 = vmatpush.msra.mxu0 %v41
    %67 = vmatpush.msra.mxu0 %v39
    %68 = vmatpush.msra.mxu0 %v37
    %69 = vmatpush.msra.mxu0 %v35
    %70 = vmatpush.msra.mxu0 %v33
    %71 = vmatpush.msra.mxu0 %v31
    %72 = vmatpush.msra.mxu0 %v29
    %73 = vmatpush.msra.mxu0 %v27
    %74 = vmatpush.msra.mxu0 %v25
    %75 = vmatpush.msra.mxu0 %v23
    %76 = vmatmul.f32.gmra.mxu0 %v55
    %v77 = vpop.f32.mrf.mxu0
    %v78 = vadd.f32 %v49, %v77
    %79 = vmatmul.f32.gmra.mxu0 %v58
    %v80 = vpop.f32.mrf.mxu0
    %v81 = vadd.f32 %v49, %v80
    %82 = vdwg.mxu0
    %83 = vmatpush.msra.mxu0 0.0
    %84 = vmatpush.msra.mxu0 0.0
    %85 = vmatpush.msra.mxu0 0.0
    %86 = vmatpush.msra.mxu0 0.0
    %87 = vmatpush.msra.mxu0 %v46
    %88 = vmatpush.msra.mxu0 %v44
    %89 = vmatpush.msra.mxu0 %v42
    %90 = vmatpush.msra.mxu0 %v40
    %91 = vmatpush.msra.mxu0 %v38
    %92 = vmatpush.msra.mxu0 %v36
    %93 = vmatpush.msra.mxu0 %v34
    %94 = vmatpush.msra.mxu0 %v32
    %95 = vmatpush.msra.mxu0 %v30
    %96 = vmatpush.msra.mxu0 %v28
    %97 = vmatpush.msra.mxu0 %v26
    %98 = vmatpush.msra.mxu0 %v24
    %99 = vmatmul.f32.gmra.mxu0 %v55
    %v100 = vpop.f32.mrf.mxu0
    %v101 = vadd.f32 %v50, %v100
    %102 = vmatmul.f32.gmra.mxu0 %v58
    %v103 = vpop.f32.mrf.mxu0
    %v104 = vadd.f32 %v50, %v103
    %105 = vdwg.mxu0
    %v106 = vxor.u32 %v78, 2147483648
    %v107 = vxor.u32 %v81, 2147483648
    %v108 = vmul.f32 %v106, 1.442695
    %v109 = vpow.pop %v108
    %v110 = vmul.f32 %v107, 1.442695
    %v111 = vpow.pop %v110
    %v112 = vadd.f32 %v109, 1.0
    %v113 = vadd.f32 %v111, 1.0
    %v114 = vrcp.pop %v112
    %v115 = vmul.f32 %v112, %v114
    %v116 = vsub.f32 1.0, %v115
    %v117 = vmul.f32 %v114, %v116
    %v118 = vadd.f32 %v114, %v117
    %vm119 = vweird.f32 %v112
    %vm120 = vweird.f32 %v114
    %vm121 = vmor %vm119, %vm120
    %v122 = vsel %vm121, %v114, %v118
    %v123 = vand.u32 2147483647, %v112
    %vm124 = vcmp.eq.f32.partialorder %v123, 8.507059e+37
    %v125 = vand.u32 %v112, 2147483648
    %v126 = vor.u32 1.1754944e-38, %v125
    %v127 = vsel %vm124, %v126, %v122
    %v128 = vmul.f32 1.0, %v127
    %v129 = vrcp.pop %v113
    %v130 = vmul.f32 %v113, %v129
    %v131 = vsub.f32 1.0, %v130
    %v132 = vmul.f32 %v129, %v131
    %v133 = vadd.f32 %v129, %v132
    %vm134 = vweird.f32 %v113
    %vm135 = vweird.f32 %v129
    %vm136 = vmor %vm134, %vm135
    %v137 = vsel %vm136, %v129, %v133
    %v138 = vand.u32 2147483647, %v113
    %vm139 = vcmp.eq.f32.partialorder %v138, 8.507059e+37
    %v140 = vand.u32 %v113, 2147483648
    %v141 = vor.u32 1.1754944e-38, %v140
    %v142 = vsel %vm139, %v141, %v137
    %v143 = vmul.f32 1.0, %v142
    %v144 = vmax.f32 %v78, 0.0
    %v145 = vmax.f32 %v81, 0.0
    %v146 = vmax.f32 %v101, 0.0
    %v147 = vmax.f32 %v104, 0.0
    %148 = vrot.lane.b32.xlu0 %v21, 64
    %v149 = vpop.permute.xlu0 %148
    %150 = vrot.lane.b32.xlu0 %v22, 64
    %v151 = vpop.permute.xlu0 %150
    %v154 = vmul.f32 %v128, %v149
    %v155 = vmul.f32 %v143, %v151
    %v156 = vld [vmem:[%s3] sm:$0xff]
    %v157 = vld [vmem:[%s3 + $0x8] sm:$0xff]
    %v158 = vld [vmem:[%s3 + $0x10] sm:$0xff]
    %v159 = vld [vmem:[%s3 + $0x18] sm:$0xff]
    %vm160 = vcmask 261120
    %v162 = vsel %vm160, %v154, 0
    %v165 = vsel %vm160, %v155, 0
    %167 = vmatpush.msra.mxu0 0.0
    %168 = vmatpush.msra.mxu0 0.0
    %169 = vmatpush.msra.mxu0 0.0
    %170 = vmatpush.msra.mxu0 0.0
    %171 = vmatpush.msra.mxu0 0.0
    %172 = vmatpush.msra.mxu0 0.0
    %173 = vmatpush.msra.mxu0 0.0
    %174 = vmatpush.msra.mxu0 0.0
    %175 = vmatpush.msra.mxu0 0.0
    %176 = vmatpush.msra.mxu0 0.0
    %177 = vmatpush.msra.mxu0 0.0
    %178 = vmatpush.msra.mxu0 0.0
    %179 = vmatpush.msra.mxu0 %v159
    %180 = vmatpush.msra.mxu0 %v158
    %181 = vmatpush.msra.mxu0 %v157
    %182 = vmatpush.msra.mxu0 %v156
    %183 = vmatmul.f32.gmra.mxu0 %v162
    %v184 = vpop.f32.mrf.mxu0
    %v185 = vadd.f32 0.0, %v184
    %186 = vmatmul.f32.gmra.mxu0 %v165
    %v187 = vpop.f32.mrf.mxu0
    %v188 = vadd.f32 0.0, %v187
    %189 = vdwg.mxu0
    %192 = vrot.lane.b32.xlu0 %v185, 64
    %v193 = vpop.permute.xlu0 %192
    %194 = vrot.lane.b32.xlu0 %v188, 64
    %v195 = vpop.permute.xlu0 %194
    %v198 = vadd.f32 %v78, %v193
    %v199 = vadd.f32 %v81, %v195
    %v200 = vtanh.pop %v198
    %v201 = vtanh.pop %v199
    %s202 = scalar_lea.vmem %s3, 32
    %v203 = vld [vmem:[%s202] sm:$0xff]
    %v204 = vld [vmem:[%s202 + $0x8] sm:$0xff]
    %v205 = vld [vmem:[%s202 + $0x10] sm:$0xff]
    %v206 = vld [vmem:[%s202 + $0x18] sm:$0xff]
    %s207 = scalar_lea.vmem %s3, 64
    %v208 = vld [vmem:[%s207] sm:$0xff]
    %v209 = vld [vmem:[%s207 + $0x8] sm:$0xff]
    %v210 = vld [vmem:[%s207 + $0x10] sm:$0xff]
    %v211 = vld [vmem:[%s207 + $0x18] sm:$0xff]
    %v213 = vsel %vm160, %v146, 0
    %v216 = vsel %vm160, %v147, 0
    %218 = vmatpush.msra.mxu0 0.0
    %219 = vmatpush.msra.mxu0 0.0
    %220 = vmatpush.msra.mxu0 0.0
    %221 = vmatpush.msra.mxu0 0.0
    %222 = vmatpush.msra.mxu0 0.0
    %223 = vmatpush.msra.mxu0 0.0
    %224 = vmatpush.msra.mxu0 0.0
    %225 = vmatpush.msra.mxu0 0.0
    %226 = vmatpush.msra.mxu0 0.0
    %227 = vmatpush.msra.mxu0 0.0
    %228 = vmatpush.msra.mxu0 0.0
    %229 = vmatpush.msra.mxu0 0.0
    %230 = vmatpush.msra.mxu0 %v211
    %231 = vmatpush.msra.mxu0 %v210
    %232 = vmatpush.msra.mxu0 %v209
    %233 = vmatpush.msra.mxu0 %v208
    %234 = vmatmul.f32.gmra.mxu0 %v213
    %v235 = vpop.f32.mrf.mxu0
    %v236 = vadd.f32 0.0, %v235
    %237 = vmatmul.f32.gmra.mxu0 %v216
    %v238 = vpop.f32.mrf.mxu0
    %v239 = vadd.f32 0.0, %v238
    %240 = vdwg.mxu0
    %243 = vrot.lane.b32.xlu0 %v144, 32
    %v244 = vpop.permute.xlu0 %243
    %245 = vrot.lane.b32.xlu0 %v145, 32
    %v246 = vpop.permute.xlu0 %245
    %v247 = vsel %vm160, %v244, 0
    %v249 = vsel %vm160, %v246, 0
    %251 = vmatpush.msra.mxu0 0.0
    %252 = vmatpush.msra.mxu0 0.0
    %253 = vmatpush.msra.mxu0 0.0
    %254 = vmatpush.msra.mxu0 0.0
    %255 = vmatpush.msra.mxu0 0.0
    %256 = vmatpush.msra.mxu0 0.0
    %257 = vmatpush.msra.mxu0 0.0
    %258 = vmatpush.msra.mxu0 0.0
    %259 = vmatpush.msra.mxu0 0.0
    %260 = vmatpush.msra.mxu0 0.0
    %261 = vmatpush.msra.mxu0 0.0
    %262 = vmatpush.msra.mxu0 0.0
    %263 = vmatpush.msra.mxu0 %v206
    %264 = vmatpush.msra.mxu0 %v205
    %265 = vmatpush.msra.mxu0 %v204
    %266 = vmatpush.msra.mxu0 %v203
    %267 = vmatmul.f32.gmra.mxu0 %v247
    %v268 = vpop.f32.mrf.mxu0
    %v269 = vadd.f32 %v236, %v268
    %270 = vmatmul.f32.gmra.mxu0 %v249
    %v271 = vpop.f32.mrf.mxu0
    %v272 = vadd.f32 %v239, %v271
    %273 = vdwg.mxu0
    %v274 = vld [vmem:[%s4] sm:$0x1]
    %v276 = vperm.slane %v274, 0
    %v278 = vadd.f32 %v269, %v276
    %v279 = vadd.f32 %v272, %v276
    %v280 = vxor.u32 %v278, 2147483648
    %v281 = vxor.u32 %v279, 2147483648
    %v282 = vmul.f32 %v280, 1.442695
    %v283 = vpow.pop %v282
    %v284 = vmul.f32 %v281, 1.442695
    %v285 = vpow.pop %v284
    %v286 = vadd.f32 %v283, 1.0
    %v287 = vadd.f32 %v285, 1.0
    %v288 = vrcp.pop %v286
    %v289 = vmul.f32 %v286, %v288
    %v290 = vsub.f32 1.0, %v289
    %v291 = vmul.f32 %v288, %v290
    %v292 = vadd.f32 %v288, %v291
    %vm293 = vweird.f32 %v286
    %vm294 = vweird.f32 %v288
    %vm295 = vmor %vm293, %vm294
    %v296 = vsel %vm295, %v288, %v292
    %v297 = vand.u32 2147483647, %v286
    %vm298 = vcmp.eq.f32.partialorder %v297, 8.507059e+37
    %v299 = vand.u32 %v286, 2147483648
    %v300 = vor.u32 1.1754944e-38, %v299
    %v301 = vsel %vm298, %v300, %v296
    %v302 = vmul.f32 1.0, %v301
    %v303 = vrcp.pop %v287
    %v304 = vmul.f32 %v287, %v303
    %v305 = vsub.f32 1.0, %v304
    %v306 = vmul.f32 %v303, %v305
    %v307 = vadd.f32 %v303, %v306
    %vm308 = vweird.f32 %v287
    %vm309 = vweird.f32 %v303
    %vm310 = vmor %vm308, %vm309
    %v311 = vsel %vm310, %v303, %v307
    %v312 = vand.u32 2147483647, %v287
    %vm313 = vcmp.eq.f32.partialorder %v312, 8.507059e+37
    %v314 = vand.u32 %v287, 2147483648
    %v315 = vor.u32 1.1754944e-38, %v314
    %v316 = vsel %vm313, %v315, %v311
    %v317 = vmul.f32 1.0, %v316
    %318 = vrot.lane.b32.xlu0 %v21, 96
    %v319 = vpop.permute.xlu0 %318
    %320 = vrot.lane.b32.xlu0 %v22, 96
    %v321 = vpop.permute.xlu0 %320
    %v324 = vmul.f32 %v128, %v319
    %v325 = vmul.f32 %v143, %v321
    %v326 = vsub.f32 1.0, %v128
    %v327 = vsub.f32 1.0, %v143
    %330 = vrot.lane.b32.xlu0 %v200, 96
    %v331 = vpop.permute.xlu0 %330
    %332 = vrot.lane.b32.xlu0 %v201, 96
    %v333 = vpop.permute.xlu0 %332
    %v336 = vmul.f32 %v326, %v331
    %v337 = vmul.f32 %v327, %v333
    %340 = vrot.lane.b32.xlu0 %v302, 32
    %v341 = vpop.permute.xlu0 %340
    %342 = vrot.lane.b32.xlu0 %v317, 32
    %v343 = vpop.permute.xlu0 %342
    %v346 = vmul.f32 %v336, %v341
    %v347 = vmul.f32 %v337, %v343
    %v348 = vadd.f32 %v324, %v346
    %v349 = vadd.f32 %v325, %v347
    %352 = vrot.lane.b32.xlu0 %v348, 96
    %v353 = vpop.permute.xlu0 %352
    %354 = vrot.lane.b32.xlu0 %v349, 96
    %v355 = vpop.permute.xlu0 %354
    %358 = vst.msk [vmem:[#allocation2] sm:$0xff] %vm160, %v353
    %359 = vst.msk [vmem:[#allocation2 + $0x8] sm:$0xff] %vm160, %v355
    // Predicated region
    $region22: #{tpu_custom_call.1} parent=1 // pred_check
      _
    $region23: #{tpu_custom_call.1} parent=1 // pred_check_branch
      %361 = sbr.rel (0) target = $region25
    $region24: #{tpu_custom_call.1} parent=1 // pred_region
      %363 = vsyncadd [#allocation3], 0
      %s364 = sshll.u32 [#allocation2], 4
      %s365 = int_to_ptr.vmem [resolvable:$true] %s364
      %s366 = sshll.u32 %s5, 4
      %s367 = int_to_ptr.hbm [resolvable:$true] %s366
      %372 = dma.vmem_to_hbm [thread:$0]  %s365, 256, %s367, [#allocation3], 128, 128, 8
    $region25: #{tpu_custom_call.1} parent=1 // pred_fallthru
      _
    // Predicated region
    $region26: #{tpu_custom_call.1} parent=1 // pred_check
      _
    $region27: #{tpu_custom_call.1} parent=1 // pred_check_branch
      %374 = sbr.rel (0) target = $region29
    $region28: #{tpu_custom_call.1} parent=1 // pred_region
      %376 = dma.done [#allocation3], 256
    $region29: #{tpu_custom_call.1} parent=1 // pred_fallthru
      _
    %377 = vsyncpa [#allocation3], 1

</llo_original>
